<compile_context>
chip_gen: v6e
topology: v6e:2x2x1
jax: 0.10.0
libtpu: 0.0.40
codegen_flags: <defaults>
</compile_context>

<pallas_src>
import functools

import jax
import jax.numpy as jnp
from jax import lax
from jax.experimental import pallas as pl
from jax.experimental.pallas import tpu as pltpu


def _round_up(n, m):
    return ((n + m - 1) // m) * m


def _vmem_usage_bytes(ts, *, S, C, n_rel, out_isz, r_isz, x_isz):
    """Estimated VMEM footprint: double-buffered blocks + in-kernel f32 temps,
    including lane (128) / sublane (8) padding of each block."""
    lane_S = _round_up(S, 128)
    lane_out = _round_up(n_rel * S, 128)
    lane_C = _round_up(C, 128)
    sub_ts = _round_up(ts, 8)
    sub_S = _round_up(S, 8)
    out_blk = sub_ts * lane_out * out_isz
    r_blk = n_rel * sub_ts * lane_S * r_isz
    xs_blk = sub_ts * lane_C * x_isz
    xo_blk = sub_S * lane_C * x_isz
    temps = 3 * sub_ts * lane_S * 4     # gram + per-relation f32 upcast + product
    return 2 * (out_blk + r_blk + xs_blk + xo_blk) + temps


def _pick_ts(S, usage_fn, budget):
    """Largest subject tile that is a multiple of 8, divides S, fits the VMEM
    budget, and leaves >= 2 s-tiles (so both v7x TensorCores get parallel work).
    Falls back to ts=8 (minimal) or ts=S (full dim is always a legal block)."""
    cap = min(512, S // 2) if S >= 16 else S
    t = (cap // 8) * 8
    while t >= 8:
        if S % t == 0 and (usage_fn(t) <= budget or t == 8):
            return t
        t -= 8
    return S


def _rescal_kernel(xs_ref, xo_ref, r_ref, o_ref, *, n_rel, S):
    # xs_ref: (1, ts, C)         subject rows of this s-tile
    # xo_ref: (1, S, C)          all object rows of this batch element
    # r_ref : (n_rel, ts, S)     relation slices for this s-tile (native layout)
    # o_ref : (1, ts, n_rel*S)   lane-fused scores
    g = lax.dot_general(                       # (ts, S) f32 gram tile on the MXU;
        xs_ref[0], xo_ref[0],                  # contract the channel dim of both
        dimension_numbers=(((1,), (1,)), ((), ())),
        preferred_element_type=jnp.float32,
    )
    # Static unrolled loop over relations (n_rel is small): no (ts, n_rel*S)
    # replica of `g` is materialized; each iteration is one dense lane-major
    # (ts, S) multiply + store.
    for r in range(n_rel):
        o_ref[0, :, pl.ds(r * S, S)] = (
            g * r_ref[r].astype(jnp.float32)).astype(o_ref.dtype)


def rescal_forward(x, R, *, out_dtype=None, r_dtype=None, x_dtype=None,
                   interpret=False):
    """RESCAL scores: einsum('bsc,rso,boc->bsro', x, R, x) -> (B, S, n_rel, S).

    out_dtype: score storage dtype (default x.dtype). bfloat16 is strongly
      recommended for large problems: accumulation stays f32 and only the final
      store is cast, halving the dominant HBM write traffic.
    r_dtype:   dtype R is streamed in (default: bfloat16 iff out_dtype is
      bfloat16, else R.dtype) — halves R read traffic when tolerable.
    x_dtype:   optional cast of x before the gram matmul (e.g. bfloat16 on v6e
      to cut MXU passes when tolerance allows); default None = keep x.dtype.
    """
    B, S, C = x.shape
    n_rel = R.shape[0]
    assert R.shape == (n_rel, S, S), (R.shape, (n_rel, S, S))
    out_dtype = jnp.dtype(out_dtype) if out_dtype is not None else jnp.dtype(x.dtype)

    if r_dtype is None:
        r_dtype = jnp.bfloat16 if out_dtype == jnp.bfloat16 else R.dtype
    r_dtype = jnp.dtype(r_dtype)
    R_in = R if jnp.dtype(R.dtype) == r_dtype else R.astype(r_dtype)
    if x_dtype is not None and jnp.dtype(x.dtype) != jnp.dtype(x_dtype):
        x = x.astype(x_dtype)
    x_isz = jnp.dtype(x.dtype).itemsize

    # Physical VMEM of the chip actually running this (v7x: 64 MiB per TC,
    # v5e/v6e: 128 MiB); leave headroom for compiler-internal scratch.
    try:
        vmem_cap = int(pltpu.get_tpu_info().vmem_capacity_bytes)
    except Exception:  # pragma: no cover - conservative fallback
        vmem_cap = 64 << 20

    usage_fn = functools.partial(
        _vmem_usage_bytes, S=S, C=C, n_rel=n_rel,
        out_isz=out_dtype.itemsize, r_isz=r_dtype.itemsize, x_isz=x_isz)
    budget = min(24 << 20, int(0.45 * vmem_cap))
    ts = _pick_ts(S, usage_fn, budget)
    vmem_limit = int(min(int(0.75 * vmem_cap),
                         max(32 << 20, usage_fn(ts) + (16 << 20))))

    out = pl.pallas_call(
        functools.partial(_rescal_kernel, n_rel=n_rel, S=S),
        out_shape=jax.ShapeDtypeStruct((B, S, n_rel * S), out_dtype),
        grid_spec=pltpu.PrefetchScalarGridSpec(
            num_scalar_prefetch=0,
            # Batch innermost: the R block index depends only on si, so each R
            # tile is DMA'd once and stays resident in VMEM across the batch.
            grid=(S // ts, B),
            in_specs=[
                pl.BlockSpec((1, ts, C), lambda si, b: (b, si, 0)),        # xs
                pl.BlockSpec((1, S, C), lambda si, b: (b, 0, 0)),          # xo
                pl.BlockSpec((n_rel, ts, S), lambda si, b: (0, si, 0)),    # R
            ],
            out_specs=pl.BlockSpec((1, ts, n_rel * S), lambda si, b: (b, si, 0)),
        ),
        compiler_params=pltpu.CompilerParams(
            dimension_semantics=("parallel", "arbitrary"),
            vmem_limit_bytes=vmem_limit,
        ),
        interpret=interpret,
    )(x, x, R_in)
    # Lane-fused (B, S, n_rel*S) -> (B, S, n_rel, S); contiguous dims, free.
    return out.reshape(B, S, n_rel, S)


if __name__ == "__main__":
    key = jax.random.PRNGKey(0)
    kx, kr, kx2, kr2 = jax.random.split(key, 4)

    # Small shapes implied by the forward: x = (batch, n_entities, channels).
    B, n_entities, C, n_relations = 2, 16, 32, 4
    x = jax.random.normal(kx, (B, n_entities, C), dtype=jnp.float32)
    R = jax.random.normal(kr, (n_relations, n_entities, n_entities),
                          dtype=jnp.float32)

    scores = jax.block_until_ready(rescal_forward(x, R))
    ref = jnp.einsum("bsc,rso,boc->bsro", x, R, x,
                     precision=jax.lax.Precision.HIGHEST)
    assert scores.shape == (B, n_entities, n_relations, n_entities)
    assert scores.dtype == x.dtype
    assert jnp.allclose(scores, ref, atol=1e-3, rtol=1e-3), \
        float(jnp.max(jnp.abs(scores - ref)))

    # Larger entity count: exercises subject tiling (ts < S, 2+ parallel tiles),
    # the bf16 score store and the bf16 R stream (f32 accumulation throughout).
    B2, S2, n_rel2 = 1, 1024, 4
    x2 = jax.random.normal(kx2, (B2, S2, C), dtype=jnp.float32)
    R2 = jax.random.normal(kr2, (n_rel2, S2, S2), dtype=jnp.float32)

    scores2 = jax.block_until_ready(rescal_forward(x2, R2, out_dtype=jnp.bfloat16))
    ref2 = jnp.einsum("bsc,rso,boc->bsro", x2, R2, x2,
                      precision=jax.lax.Precision.HIGHEST)
    assert scores2.shape == (B2, S2, n_rel2, S2)
    assert scores2.dtype == jnp.bfloat16
    assert jnp.allclose(scores2.astype(jnp.float32), ref2, atol=0.2, rtol=2e-2), \
        float(jnp.max(jnp.abs(scores2.astype(jnp.float32) - ref2)))

    print("KERNEL_OK")
</pallas_src>

<mosaic_0001>
module attributes {stable_mosaic.version = 11 : i64} {
  func.func @_rescal_kernel(%arg0: i32, %arg1: i32, %arg2: memref<1x8x32xf32, #tpu.memory_space<vmem>>, %arg3: memref<1x16x32xf32, #tpu.memory_space<vmem>>, %arg4: memref<4x8x16xf32, #tpu.memory_space<vmem>>, %arg5: memref<1x8x64xf32, #tpu.memory_space<vmem>>) attributes {dimension_semantics = [#tpu.dimension_semantics<parallel>, #tpu.dimension_semantics<arbitrary>], iteration_bounds = array<i64: 2, 2>, scalar_prefetch = 0 : i64, scratch_operands = 0 : i64, tpu.core_type = #tpu.core_type<tc>, window_params = [{transform_indices = @transform_0, window_bounds = array<i64: 1, 8, 32>}, {transform_indices = @transform_1, window_bounds = array<i64: 1, 16, 32>}, {transform_indices = @transform_2, window_bounds = array<i64: 4, 8, 16>}, {transform_indices = @transform_3, window_bounds = array<i64: 1, 8, 64>}]} {
    %c0 = arith.constant 0 : index
    %c0_0 = arith.constant 0 : index
    %c0_1 = arith.constant 0 : index
    %0 = vector.load %arg2[%c0, %c0_0, %c0_1] : memref<1x8x32xf32, #tpu.memory_space<vmem>>, vector<1x8x32xf32>
    %1 = vector.shape_cast %0 : vector<1x8x32xf32> to vector<8x32xf32>
    %c0_2 = arith.constant 0 : index
    %c0_3 = arith.constant 0 : index
    %c0_4 = arith.constant 0 : index
    %2 = vector.load %arg3[%c0_2, %c0_3, %c0_4] : memref<1x16x32xf32, #tpu.memory_space<vmem>>, vector<1x16x32xf32>
    %3 = vector.shape_cast %2 : vector<1x16x32xf32> to vector<16x32xf32>
    %cst = arith.constant dense<0.000000e+00> : vector<8x16xf32>
    %4 = tpu.matmul %1, %3, %cst {dimension_numbers = #tpu.dot_dimension_numbers<[1], [1], [0], [0], [0, 0, 1, 0], [], []>} : vector<8x32xf32>, vector<16x32xf32>, vector<8x16xf32> -> vector<8x16xf32>
    %c0_5 = arith.constant 0 : index
    %c0_6 = arith.constant 0 : index
    %c0_7 = arith.constant 0 : index
    %5 = vector.load %arg4[%c0_5, %c0_6, %c0_7] : memref<4x8x16xf32, #tpu.memory_space<vmem>>, vector<1x8x16xf32>
    %6 = vector.shape_cast %5 : vector<1x8x16xf32> to vector<8x16xf32>
    %7 = arith.mulf %4, %6 : vector<8x16xf32>
    %c0_8 = arith.constant 0 : index
    %c0_9 = arith.constant 0 : index
    %c0_10 = arith.constant 0 : index
    %8 = vector.load %arg5[%c0_8, %c0_9, %c0_10] : memref<1x8x64xf32, #tpu.memory_space<vmem>>, vector<1x8x16xf32>
    %9 = vector.shape_cast %8 : vector<1x8x16xf32> to vector<8x16xf32>
    %10 = vector.shape_cast %7 : vector<8x16xf32> to vector<1x8x16xf32>
    tpu.vector_store %arg5[%c0_8, %c0_9, %c0_10], %10 {strides = array<i32>} : memref<1x8x64xf32, #tpu.memory_space<vmem>>, vector<1x8x16xf32>,
    %c1 = arith.constant 1 : index
    %c0_11 = arith.constant 0 : index
    %c0_12 = arith.constant 0 : index
    %11 = vector.load %arg4[%c1, %c0_11, %c0_12] : memref<4x8x16xf32, #tpu.memory_space<vmem>>, vector<1x8x16xf32>
    %12 = vector.shape_cast %11 : vector<1x8x16xf32> to vector<8x16xf32>
    %13 = arith.mulf %4, %12 : vector<8x16xf32>
    %c0_13 = arith.constant 0 : index
    %c0_14 = arith.constant 0 : index
    %c16 = arith.constant 16 : index
    %14 = vector.load %arg5[%c0_13, %c0_14, %c16] : memref<1x8x64xf32, #tpu.memory_space<vmem>>, vector<1x8x16xf32>
    %15 = vector.shape_cast %14 : vector<1x8x16xf32> to vector<8x16xf32>
    %16 = vector.shape_cast %13 : vector<8x16xf32> to vector<1x8x16xf32>
    tpu.vector_store %arg5[%c0_13, %c0_14, %c16], %16 {strides = array<i32>} : memref<1x8x64xf32, #tpu.memory_space<vmem>>, vector<1x8x16xf32>,
    %c2 = arith.constant 2 : index
    %c0_15 = arith.constant 0 : index
    %c0_16 = arith.constant 0 : index
    %17 = vector.load %arg4[%c2, %c0_15, %c0_16] : memref<4x8x16xf32, #tpu.memory_space<vmem>>, vector<1x8x16xf32>
    %18 = vector.shape_cast %17 : vector<1x8x16xf32> to vector<8x16xf32>
    %19 = arith.mulf %4, %18 : vector<8x16xf32>
    %c0_17 = arith.constant 0 : index
    %c0_18 = arith.constant 0 : index
    %c32 = arith.constant 32 : index
    %20 = vector.load %arg5[%c0_17, %c0_18, %c32] : memref<1x8x64xf32, #tpu.memory_space<vmem>>, vector<1x8x16xf32>
    %21 = vector.shape_cast %20 : vector<1x8x16xf32> to vector<8x16xf32>
    %22 = vector.shape_cast %19 : vector<8x16xf32> to vector<1x8x16xf32>
    tpu.vector_store %arg5[%c0_17, %c0_18, %c32], %22 {strides = array<i32>} : memref<1x8x64xf32, #tpu.memory_space<vmem>>, vector<1x8x16xf32>,
    %c3 = arith.constant 3 : index
    %c0_19 = arith.constant 0 : index
    %c0_20 = arith.constant 0 : index
    %23 = vector.load %arg4[%c3, %c0_19, %c0_20] : memref<4x8x16xf32, #tpu.memory_space<vmem>>, vector<1x8x16xf32>
    %24 = vector.shape_cast %23 : vector<1x8x16xf32> to vector<8x16xf32>
    %25 = arith.mulf %4, %24 : vector<8x16xf32>
    %c0_21 = arith.constant 0 : index
    %c0_22 = arith.constant 0 : index
    %c48 = arith.constant 48 : index
    %26 = vector.load %arg5[%c0_21, %c0_22, %c48] : memref<1x8x64xf32, #tpu.memory_space<vmem>>, vector<1x8x16xf32>
    %27 = vector.shape_cast %26 : vector<1x8x16xf32> to vector<8x16xf32>
    %28 = vector.shape_cast %25 : vector<8x16xf32> to vector<1x8x16xf32>
    tpu.vector_store %arg5[%c0_21, %c0_22, %c48], %28 {strides = array<i32>} : memref<1x8x64xf32, #tpu.memory_space<vmem>>, vector<1x8x16xf32>,
    return
  }
  func.func @transform_0(%arg0: i32, %arg1: i32) -> (i32, i32, i32) {
    %c0_i32 = arith.constant 0 : i32
    %c0_i32_0 = arith.constant 0 : i32
    return %arg1, %arg0, %c0_i32 : i32, i32, i32
  }
  func.func @transform_1(%arg0: i32, %arg1: i32) -> (i32, i32, i32) {
    %c0_i32 = arith.constant 0 : i32
    %c0_i32_0 = arith.constant 0 : i32
    %c0_i32_1 = arith.constant 0 : i32
    return %arg1, %c0_i32, %c0_i32_0 : i32, i32, i32
  }
  func.func @transform_2(%arg0: i32, %arg1: i32) -> (i32, i32, i32) {
    %c0_i32 = arith.constant 0 : i32
    %c0_i32_0 = arith.constant 0 : i32
    %c0_i32_1 = arith.constant 0 : i32
    return %c0_i32, %arg0, %c0_i32_0 : i32, i32, i32
  }
  func.func @transform_3(%arg0: i32, %arg1: i32) -> (i32, i32, i32) {
    %c0_i32 = arith.constant 0 : i32
    %c0_i32_0 = arith.constant 0 : i32
    return %arg1, %arg0, %c0_i32 : i32, i32, i32
  }
}

</mosaic_0001>

<llo_original>
// kernel: tpu_custom_call.1
$region0: #{tpu_custom_call.1}
  #allocation0 [shape = 'u32[]', space=smem, size = 0x4, offset = 0x4, fixed_abs, tag = 'smem constant byte address 0x4 - core index']
  #allocation1 [shape = 'u32[144,128]{1,0:T(1,128)}', space=vmem, size = 0x12000, scoped, tag = 'internal scratch']
  %s0 = inlined_call_operand.hbm [shape: f32[2,16,32], index: 0, kind: input, shape index: {}]
  %s1 = inlined_call_operand.hbm [shape: f32[2,16,32], index: 1, kind: input, shape index: {}]
  %s2 = inlined_call_operand.hbm [shape: f32[4,16,16], index: 2, kind: input, shape index: {}]
  %s3 = inlined_call_operand.hbm [shape: f32[2,16,64], index: 3, kind: output, shape index: {}]
  %s4 = sld [smem:[#allocation0]]
  $region57: #{tpu_custom_call.1} parent=0
    _
  %s6 = ssub.s32 1, %s4
  %s7 = scalar_select 0, %s6, %s4
  $region1: #{tpu_custom_call.1} parent=0
    #allocation2 [shape = 'u8[8192]{0}', space=vmem, size = 0x2000, scoped, tag = 'input window, operand 0']
    #allocation3 [shape = 's32[2]{0}', space=sflag, size = 0x8, scoped, tag = 'scoped memory for tpu_custom_call.1']
    #allocation4 [shape = 's32[2]{0}', space=sflag, size = 0x8, scoped, tag = 'scoped memory for tpu_custom_call.1']
    #allocation5 [shape = 'u8[16384]{0}', space=vmem, size = 0x4000, scoped, tag = 'input window, operand 1']
    #allocation6 [shape = 's32[2]{0}', space=sflag, size = 0x8, scoped, tag = 'scoped memory for tpu_custom_call.1']
    #allocation7 [shape = 'u8[32768]{0}', space=vmem, size = 0x8000, scoped, tag = 'input window, operand 2']
    #allocation8 [shape = 'u8[8192]{0}', space=vmem, size = 0x2000, scoped, tag = 'output window, operand 0']
    %8 = vsyncpa [#allocation3], 0
    %s9 = scalar_lea.sflag [#allocation3], 1
    %10 = vsyncpa %s9, 0
    %11 = vsyncpa [#allocation6], 0
    %s12 = scalar_lea.sflag [#allocation6], 1
    %13 = vsyncpa %s12, 0
    %14 = vsyncpa [#allocation4], 0
    %s15 = scalar_lea.sflag [#allocation4], 1
    %16 = vsyncpa %s15, 0
    loop: start=0, step=1, limit=6
    $region2: #{tpu_custom_call.1} parent=1 // loop_pre_header
      _
    $region3: #{tpu_custom_call.1} parent=1 // loop_header
      %s18 = sphi 0, %s22
      %p19 = scmp.ge.s32.totalorder %s18, 6
      %s25 = sphi 0, %s37
      %s26 = sphi 0, %s33
      %s27 = sphi 0, %s25
      %s28 = sphi 0, %s26
      %s29 = sphi 0, %s27
      %s30 = sphi 0, %s28
      %s42 = sphi 0, %s44
      %s45 = sphi 0, %s42
      %s46 = sphi 0, %s45
      %s62 = sphi 0, %s46
      %s68 = sphi 0, %s70
      %s71 = sphi 0, %s68
      %s72 = sphi 0, %s71
      %s88 = sphi 0, %s72
      %s94 = sphi 0, %s96
      %s97 = sphi 0, %s94
      %s98 = sphi 0, %s97
      %s114 = sphi 0, %s98
      %s122 = sphi 0, %s124
      %s125 = sphi 0, %s122
      %s126 = sphi 0, %s125
      %s142 = sphi 0, %s126
    $region4: #{tpu_custom_call.1} parent=1 // loop_header_branch
      %21 = sbr.rel (%p19) target = $region8
    $region5: #{tpu_custom_call.1} parent=1 // loop_body
      %s23 = ssub.s32 %s18, 1
      %s24 = ssub.s32 %s18, 2
      %s31 = sadd.s32 1, %s26
      %p32 = scmp.ge.s32.totalorder %s31, 2
      %s33 = scalar_select %p32, 0, %s31
      %s34 = sadd.s32 1, %s25
      %s35 = scalar_select %p32, %s34, %s25
      %p36 = scmp.ge.s32.totalorder %s35, 2
      %s37 = scalar_select %p36, 0, %s35
      %s38 = ssub.s32 %s26, %s33
      %s39 = ssub.s32 %s25, %s37
      %s40 = sor.u32 %s38, %s39
      %p41 = scmp.eq.s32.totalorder %s40, 0
      %s43 = sadd.s32 %s42, 1
      %s44 = scalar_select %p41, %s42, %s43
      %p47 = pneg %p41
      %p48 = scmp.eq.s32.totalorder %s18, 3
      %p49 = por %p47, %p48
      %p50 = scmp.ne.s32.totalorder %s42, %s45
      %p51 = scmp.eq.s32.totalorder %s18, 0
      %p52 = por %p50, %p51
      %p53 = scmp.ne.s32.totalorder %s42, %s45
      %p54 = scmp.eq.s32.totalorder %s23, 3
      %p55 = por %p53, %p54
      %p56 = scmp.ne.s32.totalorder %s45, %s46
      %p57 = scmp.eq.s32.totalorder %s23, 0
      %p58 = por %p56, %p57
      %p59 = scmp.ne.s32.totalorder %s45, %s46
      %p60 = scmp.eq.s32.totalorder %s24, 3
      %p61 = por %p59, %p60
      %p63 = scmp.ne.s32.totalorder %s46, %s62
      %p64 = scmp.eq.s32.totalorder %s24, 0
      %p65 = por %p63, %p64
      %s66 = ssub.s32 %s26, %s33
      %p67 = scmp.eq.s32.totalorder %s66, 0
      %s69 = sadd.s32 %s68, 1
      %s70 = scalar_select %p67, %s68, %s69
      %p73 = pneg %p67
      %p74 = scmp.eq.s32.totalorder %s18, 3
      %p75 = por %p73, %p74
      %p76 = scmp.ne.s32.totalorder %s68, %s71
      %p77 = scmp.eq.s32.totalorder %s18, 0
      %p78 = por %p76, %p77
      %p79 = scmp.ne.s32.totalorder %s68, %s71
      %p80 = scmp.eq.s32.totalorder %s23, 3
      %p81 = por %p79, %p80
      %p82 = scmp.ne.s32.totalorder %s71, %s72
      %p83 = scmp.eq.s32.totalorder %s23, 0
      %p84 = por %p82, %p83
      %p85 = scmp.ne.s32.totalorder %s71, %s72
      %p86 = scmp.eq.s32.totalorder %s24, 3
      %p87 = por %p85, %p86
      %p89 = scmp.ne.s32.totalorder %s72, %s88
      %p90 = scmp.eq.s32.totalorder %s24, 0
      %p91 = por %p89, %p90
      %s92 = ssub.s32 %s25, %s37
      %p93 = scmp.eq.s32.totalorder %s92, 0
      %s95 = sadd.s32 %s94, 1
      %s96 = scalar_select %p93, %s94, %s95
      %p99 = pneg %p93
      %p100 = scmp.eq.s32.totalorder %s18, 3
      %p101 = por %p99, %p100
      %p102 = scmp.ne.s32.totalorder %s94, %s97
      %p103 = scmp.eq.s32.totalorder %s18, 0
      %p104 = por %p102, %p103
      %p105 = scmp.ne.s32.totalorder %s94, %s97
      %p106 = scmp.eq.s32.totalorder %s23, 3
      %p107 = por %p105, %p106
      %p108 = scmp.ne.s32.totalorder %s97, %s98
      %p109 = scmp.eq.s32.totalorder %s23, 0
      %p110 = por %p108, %p109
      %p111 = scmp.ne.s32.totalorder %s97, %s98
      %p112 = scmp.eq.s32.totalorder %s24, 3
      %p113 = por %p111, %p112
      %p115 = scmp.ne.s32.totalorder %s98, %s114
      %p116 = scmp.eq.s32.totalorder %s24, 0
      %p117 = por %p115, %p116
      %s118 = ssub.s32 %s26, %s33
      %s119 = ssub.s32 %s25, %s37
      %s120 = sor.u32 %s118, %s119
      %p121 = scmp.eq.s32.totalorder %s120, 0
      %s123 = sadd.s32 %s122, 1
      %s124 = scalar_select %p121, %s122, %s123
      %p127 = pneg %p121
      %p128 = scmp.eq.s32.totalorder %s18, 3
      %p129 = por %p127, %p128
      %p130 = scmp.ne.s32.totalorder %s122, %s125
      %p131 = scmp.eq.s32.totalorder %s18, 0
      %p132 = por %p130, %p131
      %p133 = scmp.ne.s32.totalorder %s122, %s125
      %p134 = scmp.eq.s32.totalorder %s23, 3
      %p135 = por %p133, %p134
      %p136 = scmp.ne.s32.totalorder %s125, %s126
      %p137 = scmp.eq.s32.totalorder %s23, 0
      %p138 = por %p136, %p137
      %p139 = scmp.ne.s32.totalorder %s125, %s126
      %p140 = scmp.eq.s32.totalorder %s24, 3
      %p141 = por %p139, %p140
      %p143 = scmp.ne.s32.totalorder %s126, %s142
      %p144 = scmp.eq.s32.totalorder %s24, 0
      %p145 = por %p143, %p144
      %p146 = scmp.le.s32.totalorder 1, %s18
      %p147 = scmp.lt.s32.totalorder %s18, 5
      %p148 = pnand %p146, %p147
      %p149 = pneg %p148
      // Predicated region
      $region9: #{tpu_custom_call.1} parent=5 // pred_check
        _
      $region10: #{tpu_custom_call.1} parent=5 // pred_check_branch
        %151 = sbr.rel (%p148) target = $region12
      $region11: #{tpu_custom_call.1} parent=5 // pred_region
        %s152 = ssub.s32 %s18, 1
      $region12: #{tpu_custom_call.1} parent=5 // pred_fallthru
        _
      %p153 = scmp.lt.s32.totalorder %s18, 4
      // Predicated region
      $region13: #{tpu_custom_call.1} parent=5 // pred_check
        %p154 = pneg %p153
      $region14: #{tpu_custom_call.1} parent=5 // pred_check_branch
        %156 = sbr.rel (%p154) target = $region16
      $region15: #{tpu_custom_call.1} parent=5 // pred_region
        // Predicated region
        $region17: #{tpu_custom_call.1} parent=15 // pred_check
          %p157 = pneg %p52
        $region18: #{tpu_custom_call.1} parent=15 // pred_check_branch
          %159 = sbr.rel (%p157) target = $region20
        $region19: #{tpu_custom_call.1} parent=15 // pred_region
          %s160 = sand.u32 %s42, 1
          %s161 = scalar_lea.sflag [#allocation3], %s160
          %s162 = sand.u32 %s42, 1
          %s163 = smul.addr %s162, 8
          %s164 = scalar_lea.vmem [#allocation2], %s163
          %s166 = ssub.s32 128, 128
          %167 = vsyncadd %s161, %s166
          %s168 = smul.addr %s26, 2
          %s169 = sadd.s32 %s25, %s168
          %s170 = smul.addr %s169, 128
          %s171 = scalar_lea.hbm %s0, %s170
          %s173 = sshll.u32 %s164, 4
          %s174 = int_to_ptr.vmem [resolvable:$true] %s173
          %176 = dma.hbm_to_vmem [thread:$0]  %s171, 128, %s174, %s161
        $region20: #{tpu_custom_call.1} parent=15 // pred_fallthru
          _
        // Predicated region
        $region21: #{tpu_custom_call.1} parent=15 // pred_check
          %p177 = pneg %p78
        $region22: #{tpu_custom_call.1} parent=15 // pred_check_branch
          %179 = sbr.rel (%p177) target = $region24
        $region23: #{tpu_custom_call.1} parent=15 // pred_region
          %s180 = sand.u32 %s18, 1
          %s181 = scalar_lea.sflag [#allocation6], %s180
          %s182 = sand.u32 %s68, 1
          %s183 = smul.addr %s182, 16
          %s184 = scalar_lea.vmem [#allocation5], %s183
          %s186 = ssub.s32 256, 256
          %187 = vsyncadd %s181, %s186
          %s188 = smul.addr %s26, 2
          %s189 = smul.addr %s188, 128
          %s190 = scalar_lea.hbm %s1, %s189
          %s191 = sshll.u32 %s184, 4
          %s192 = int_to_ptr.vmem [resolvable:$true] %s191
          %197 = dma.hbm_to_vmem [thread:$0]  %s190, 256, %s192, %s181, 128, 128, 8
        $region24: #{tpu_custom_call.1} parent=15 // pred_fallthru
          _
        // Predicated region
        $region25: #{tpu_custom_call.1} parent=15 // pred_check
          %p198 = pneg %p104
        $region26: #{tpu_custom_call.1} parent=15 // pred_check_branch
          %200 = sbr.rel (%p198) target = $region28
        $region27: #{tpu_custom_call.1} parent=15 // pred_region
          %s201 = sand.u32 %s18, 1
          %s202 = scalar_lea.sflag [#allocation6], %s201
          %s203 = sand.u32 %s94, 1
          %s204 = smul.addr %s203, 32
          %s205 = scalar_lea.vmem [#allocation7], %s204
          %s207 = ssub.s32 512, 512
          %208 = vsyncadd %s202, %s207
          %s209 = smul.addr %s25, 128
          %s210 = scalar_lea.hbm %s2, %s209
          %s211 = sshll.u32 %s205, 4
          %s212 = int_to_ptr.vmem [resolvable:$true] %s211
          %217 = dma.hbm_to_vmem [thread:$0]  %s210, 512, %s212, %s202, 256, 128, 8
        $region28: #{tpu_custom_call.1} parent=15 // pred_fallthru
          _
      $region16: #{tpu_custom_call.1} parent=5 // pred_fallthru
        _
      %p218 = scmp.le.s32.totalorder 1, %s18
      %p219 = scmp.lt.s32.totalorder %s18, 5
      %p220 = pnand %p218, %p219
      %p221 = pneg %p220
      // Predicated region
      $region29: #{tpu_custom_call.1} parent=5 // pred_check
        _
      $region30: #{tpu_custom_call.1} parent=5 // pred_check_branch
        %223 = sbr.rel (%p220) target = $region32
      $region31: #{tpu_custom_call.1} parent=5 // pred_region
        %s224 = ssub.s32 %s18, 1
        %s225 = sand.u32 %s45, 1
        %s226 = scalar_lea.sflag [#allocation3], %s225
        %s227 = sand.u32 %s45, 1
        %s228 = smul.addr %s227, 8
        %s229 = scalar_lea.vmem [#allocation2], %s228
        // Predicated region
        $region33: #{tpu_custom_call.1} parent=31 // pred_check
          %p230 = pneg %p58
        $region34: #{tpu_custom_call.1} parent=31 // pred_check_branch
          %232 = sbr.rel (%p230) target = $region36
        $region35: #{tpu_custom_call.1} parent=31 // pred_region
          %233 = dma.done %s226, 128
        $region36: #{tpu_custom_call.1} parent=31 // pred_fallthru
          _
        %s234 = sand.u32 %s23, 1
        %s235 = scalar_lea.sflag [#allocation6], %s234
        %s236 = sand.u32 %s71, 1
        %s237 = smul.addr %s236, 16
        %s238 = scalar_lea.vmem [#allocation5], %s237
        // Predicated region
        $region37: #{tpu_custom_call.1} parent=31 // pred_check
          %p239 = pneg %p84
        $region38: #{tpu_custom_call.1} parent=31 // pred_check_branch
          %241 = sbr.rel (%p239) target = $region40
        $region39: #{tpu_custom_call.1} parent=31 // pred_region
          %242 = dma.done %s235, 256
        $region40: #{tpu_custom_call.1} parent=31 // pred_fallthru
          _
        %s243 = sand.u32 %s23, 1
        %s244 = scalar_lea.sflag [#allocation6], %s243
        %s245 = sand.u32 %s97, 1
        %s246 = smul.addr %s245, 32
        %s247 = scalar_lea.vmem [#allocation7], %s246
        // Predicated region
        $region41: #{tpu_custom_call.1} parent=31 // pred_check
          %p248 = pneg %p110
        $region42: #{tpu_custom_call.1} parent=31 // pred_check_branch
          %250 = sbr.rel (%p248) target = $region44
        $region43: #{tpu_custom_call.1} parent=31 // pred_region
          %251 = dma.done %s244, 512
        $region44: #{tpu_custom_call.1} parent=31 // pred_fallthru
          _
        %s252 = sand.u32 %s45, 1
        %s253 = scalar_lea.sflag [#allocation3], %s252
        %s254 = sand.u32 %s45, 1
        %s255 = smul.addr %s254, 8
        %s256 = scalar_lea.vmem [#allocation2], %s255
        %p257 = pneg %p58
        %p258 = pneg %p55
        %s259 = sand.u32 %s23, 1
        %s260 = scalar_lea.sflag [#allocation6], %s259
        %s261 = sand.u32 %s71, 1
        %s262 = smul.addr %s261, 16
        %s263 = scalar_lea.vmem [#allocation5], %s262
        %p264 = pneg %p84
        %p265 = pneg %p81
        %s266 = sand.u32 %s23, 1
        %s267 = scalar_lea.sflag [#allocation6], %s266
        %s268 = sand.u32 %s97, 1
        %s269 = smul.addr %s268, 32
        %s270 = scalar_lea.vmem [#allocation7], %s269
        %p271 = pneg %p110
        %p272 = pneg %p107
        %p273 = pneg %p138
        %p274 = pneg %p135
        %s275 = sand.u32 %s125, 1
        %s276 = scalar_lea.sflag [#allocation4], %s275
        %s277 = sand.u32 %s125, 1
        %s278 = smul.addr %s277, 8
        %s279 = scalar_lea.vmem [#allocation8], %s278
        %v280 = vld [vmem:[%s229] sm:$0xff]
        %v281 = vld [vmem:[%s238] sm:$0xff]
        %v282 = vld [vmem:[%s238 + $0x8] sm:$0xff]
        %vm283 = vcmask 261120
        %v285 = vsel %vm283, %v280, 0
        %v288 = vsel %vm283, %v281, 0
        %v291 = vsel %vm283, %v282, 0
        %293 = vmatprep.subr.mxu0 0.0
        %294 = vmatpush1.xpose.msra.mxu0 0.0
        %295 = vmatprep.subr.mxu0 0.0
        %296 = vmatpush1.xpose.msra.mxu0 0.0
        %297 = vmatprep.subr.mxu0 0.0
        %298 = vmatpush1.xpose.msra.mxu0 0.0
        %299 = vmatprep.subr.mxu0 0.0
        %300 = vmatpush1.xpose.msra.mxu0 0.0
        %301 = vmatprep.subr.mxu0 0.0
        %302 = vmatpush1.xpose.msra.mxu0 0.0
        %303 = vmatprep.subr.mxu0 0.0
        %304 = vmatpush1.xpose.msra.mxu0 0.0
        %305 = vmatprep.subr.mxu0 0.0
        %306 = vmatpush1.xpose.msra.mxu0 0.0
        %307 = vmatprep.subr.mxu0 0.0
        %308 = vmatpush1.xpose.msra.mxu0 0.0
        %309 = vmatprep.subr.mxu0 0.0
        %310 = vmatpush1.xpose.msra.mxu0 0.0
        %311 = vmatprep.subr.mxu0 0.0
        %312 = vmatpush1.xpose.msra.mxu0 0.0
        %313 = vmatprep.subr.mxu0 0.0
        %314 = vmatpush1.xpose.msra.mxu0 0.0
        %315 = vmatprep.subr.mxu0 0.0
        %316 = vmatpush1.xpose.msra.mxu0 0.0
        %317 = vmatprep.subr.mxu0 0.0
        %318 = vmatpush1.xpose.msra.mxu0 0.0
        %319 = vmatprep.subr.mxu0 0.0
        %320 = vmatpush1.xpose.msra.mxu0 0.0
        %321 = vmatprep.subr.mxu0 0.0
        %322 = vmatpush1.xpose.msra.mxu0 %v291
        %323 = vmatprep.subr.mxu0 0.0
        %324 = vmatpush1.xpose.msra.mxu0 %v288
        %325 = vmatprep.subr.mxu0 0.0
        %326 = vmatpush2.xpose.msra.mxu0 0.0
        %327 = vmatprep.subr.mxu0 0.0
        %328 = vmatpush2.xpose.msra.mxu0 0.0
        %329 = vmatprep.subr.mxu0 0.0
        %330 = vmatpush2.xpose.msra.mxu0 0.0
        %331 = vmatprep.subr.mxu0 0.0
        %332 = vmatpush2.xpose.msra.mxu0 0.0
        %333 = vmatprep.subr.mxu0 0.0
        %334 = vmatpush2.xpose.msra.mxu0 0.0
        %335 = vmatprep.subr.mxu0 0.0
        %336 = vmatpush2.xpose.msra.mxu0 0.0
        %337 = vmatprep.subr.mxu0 0.0
        %338 = vmatpush2.xpose.msra.mxu0 0.0
        %339 = vmatprep.subr.mxu0 0.0
        %340 = vmatpush2.xpose.msra.mxu0 0.0
        %341 = vmatprep.subr.mxu0 0.0
        %342 = vmatpush2.xpose.msra.mxu0 0.0
        %343 = vmatprep.subr.mxu0 0.0
        %344 = vmatpush2.xpose.msra.mxu0 0.0
        %345 = vmatprep.subr.mxu0 0.0
        %346 = vmatpush2.xpose.msra.mxu0 0.0
        %347 = vmatprep.subr.mxu0 0.0
        %348 = vmatpush2.xpose.msra.mxu0 0.0
        %349 = vmatprep.subr.mxu0 0.0
        %350 = vmatpush2.xpose.msra.mxu0 0.0
        %351 = vmatprep.subr.mxu0 0.0
        %352 = vmatpush2.xpose.msra.mxu0 0.0
        %353 = vmatprep.subr.mxu0 0.0
        %354 = vmatpush2.xpose.msra.mxu0 0.0
        %355 = vmatprep.subr.mxu0 0.0
        %356 = vmatpush2.xpose.msra.mxu0 0.0
        %357 = vmatprep.mubr.f32.mxu0 0.0
        %358 = vmatmul.mubr.f32.gmra.mxu0 %v285
        %v359 = vpop.f32.mrf.mxu0
        %v360 = vadd.f32 0.0, %v359
        %v361 = vpop.f32.mrf.mxu0
        %362 = vdwg.mxu0
        %v363 = vld [vmem:[%s247] sm:$0xff]
        %v364 = vmul.f32 %v360, %v363
        %vm365 = vcmask 130048
        %366 = vst.msk [vmem:[%s279] sm:$0xff] %vm365, %v364
        %s367 = scalar_lea.vmem %s247, 8 [#allocation7]
        %v368 = vld [vmem:[%s367] sm:$0xff]
        %v369 = vmul.f32 %v360, %v368
        %371 = vrot.lane.b32.xlu0 %v369, 16
        %v372 = vpop.permute.xlu0 %371
        %vm374 = vcmask 261248
        %375 = vst.msk [vmem:[%s279] sm:$0xff] %vm374, %v372
        %s376 = scalar_lea.vmem %s247, 16 [#allocation7]
        %v377 = vld [vmem:[%s376] sm:$0xff]
        %v378 = vmul.f32 %v360, %v377
        %380 = vrot.lane.b32.xlu0 %v378, 32
        %v381 = vpop.permute.xlu0 %380
        %vm383 = vcmask 392448
        %384 = vst.msk [vmem:[%s279] sm:$0xff] %vm383, %v381
        %s385 = scalar_lea.vmem %s247, 24 [#allocation7]
        %v386 = vld [vmem:[%s385] sm:$0xff]
        %v387 = vmul.f32 %v360, %v386
        %389 = vrot.lane.b32.xlu0 %v387, 48
        %v390 = vpop.permute.xlu0 %389
        %vm392 = vcmask 523648
        %393 = vst.msk [vmem:[%s279] sm:$0xff] %vm392, %v390
        %s394 = sand.u32 %s125, 1
        %s395 = scalar_lea.sflag [#allocation4], %s394
        %s396 = sand.u32 %s125, 1
        %s397 = smul.addr %s396, 8
        %s398 = scalar_lea.vmem [#allocation8], %s397
        // Predicated region
        $region45: #{tpu_custom_call.1} parent=31 // pred_check
          %p399 = pneg %p135
        $region46: #{tpu_custom_call.1} parent=31 // pred_check_branch
          %401 = sbr.rel (%p399) target = $region48
        $region47: #{tpu_custom_call.1} parent=31 // pred_region
          %s403 = ssub.s32 128, 128
          %404 = vsyncadd %s395, %s403
          %s405 = smul.addr %s28, 2
          %s406 = sadd.s32 %s27, %s405
          %s407 = smul.addr %s406, 128
          %s408 = scalar_lea.hbm %s3, %s407
          %s410 = sshll.u32 %s398, 4
          %s411 = int_to_ptr.vmem [resolvable:$true] %s410
          %413 = dma.vmem_to_hbm [thread:$0]  %s411, 128, %s408, %s395
        $region48: #{tpu_custom_call.1} parent=31 // pred_fallthru
          _
      $region32: #{tpu_custom_call.1} parent=5 // pred_fallthru
        _
      %p414 = scmp.le.s32.totalorder 2, %s18
      // Predicated region
      $region49: #{tpu_custom_call.1} parent=5 // pred_check
        %p415 = pneg %p414
      $region50: #{tpu_custom_call.1} parent=5 // pred_check_branch
        %417 = sbr.rel (%p415) target = $region52
      $region51: #{tpu_custom_call.1} parent=5 // pred_region
        %s418 = ssub.s32 %s18, 2
        // Predicated region
        $region53: #{tpu_custom_call.1} parent=51 // pred_check
          %p419 = pneg %p141
        $region54: #{tpu_custom_call.1} parent=51 // pred_check_branch
          %421 = sbr.rel (%p419) target = $region56
        $region55: #{tpu_custom_call.1} parent=51 // pred_region
          %s422 = sand.u32 %s126, 1
          %s423 = scalar_lea.sflag [#allocation4], %s422
          %s424 = sand.u32 %s126, 1
          %s425 = smul.addr %s424, 8
          %s426 = scalar_lea.vmem [#allocation8], %s425
          %427 = dma.done %s423, 128
        $region56: #{tpu_custom_call.1} parent=51 // pred_fallthru
          _
      $region52: #{tpu_custom_call.1} parent=5 // pred_fallthru
        _
    $region6: #{tpu_custom_call.1} parent=1 // loop_footer
      %s22 = sadd.s32 1, %s18
    $region7: #{tpu_custom_call.1} parent=1 // loop_footer_branch
      %17 = sbr.rel target = $region3
    $region8: #{tpu_custom_call.1} parent=1 // loop_exit
      _
    %428 = vsyncpa [#allocation3], 1
    %s429 = scalar_lea.sflag [#allocation3], 1
    %430 = vsyncpa %s429, 1
    %431 = vsyncpa [#allocation6], 1
    %s432 = scalar_lea.sflag [#allocation6], 1
    %433 = vsyncpa %s432, 1
    %434 = vsyncpa [#allocation4], 1
    %s435 = scalar_lea.sflag [#allocation4], 1
    %436 = vsyncpa %s435, 1

</llo_original>
